<compile_context>
chip_gen: v6e
topology: v6e:2x2x1
jax: 0.10.0
libtpu: 0.0.40
codegen_flags: <defaults>
</compile_context>

<pallas_src>
import functools

import jax
import jax.numpy as jnp
from jax.experimental import pallas as pl
from jax.experimental.pallas import tpu as pltpu


LANE_CANDIDATES = (4096, 2048, 1024, 512, 256, 128)
TARGET_BLOCK_BYTES = 2 * 1024 * 1024  # ~2 MiB per (input or output) buffer


def relu6_kernel(x_ref, o_ref, *, max_value):
    x = x_ref[...]
    # ReLU then clamp(max=max_value)  ==  min(max(x, 0), max_value)
    o_ref[...] = jnp.minimum(jnp.maximum(x, 0), max_value)


def _relu6_2d(x2d, max_value, grid_rows, tr, lanes):
    kernel = functools.partial(relu6_kernel, max_value=max_value)
    return pl.pallas_call(
        kernel,
        out_shape=jax.ShapeDtypeStruct(x2d.shape, x2d.dtype),
        grid=(grid_rows,),
        in_specs=[pl.BlockSpec((tr, lanes), lambda i: (i, 0))],
        out_specs=pl.BlockSpec((tr, lanes), lambda i: (i, 0)),
        compiler_params=pltpu.CompilerParams(
            # Independent row-blocks: lets Mosaic shard the grid across the
            # two TensorCores on v7x; near-zero cost on v5e/v6e.
            dimension_semantics=("parallel",),
        ),
    )(x2d)


def relu_module_forward(x, max_value=6.0):
    """Elementwise ReLU + clamp(max=max_value), matching the PyTorch module."""
    orig_shape = x.shape
    dtype = x.dtype
    total = x.size
    x_flat = x.reshape(-1)

    # At most ONE pad (only if the element count isn't a multiple of 128).
    pad = (-total) % 128
    if pad:
        x_flat = jnp.pad(x_flat, (0, pad))
    padded_total = total + pad

    # Widest lane-dense last dim that divides the (padded) element count.
    lanes = 128
    for w in LANE_CANDIDATES:
        if padded_total % w == 0:
            lanes = w
            break
    rows = padded_total // lanes
    x2d = x_flat.reshape(rows, lanes)

    # ~2 MiB per block. tr must be a multiple of 8 unless it spans all rows
    # (block shape equal to the full array dim is always legal).
    itemsize = jnp.dtype(dtype).itemsize
    tr = max(1, TARGET_BLOCK_BYTES // (lanes * itemsize))
    if tr >= rows:
        tr = rows  # single block covering the whole slab (small inputs)
    else:
        tr = max(8, (tr // 8) * 8)
    # Ragged last block (rows % tr != 0) is handled by Pallas with masked
    # boundary loads/stores, so no row padding is required.
    grid_rows = pl.cdiv(rows, tr)

    out2d = _relu6_2d(x2d, max_value, grid_rows, tr, lanes)

    out_flat = out2d.reshape(-1)
    if pad:
        out_flat = out_flat[:total]
    return out_flat.reshape(orig_shape)


if __name__ == "__main__":
    # Match the PyTorch script: input = torch.randn(1, 2, 64, 64)
    key = jax.random.PRNGKey(0)
    x = jax.random.normal(key, (1, 2, 64, 64), dtype=jnp.float32) * 4.0  # scale so clamp matters

    out = relu_module_forward(x, max_value=6.0)
    out = jax.block_until_ready(out)

    # Reference check in plain JAX
    ref = jnp.minimum(jnp.maximum(x, 0.0), 6.0)
    assert out.shape == x.shape
    assert out.dtype == x.dtype
    assert jnp.allclose(out, ref), "mismatch vs reference"

    print("KERNEL_OK")
</pallas_src>

<mosaic_0001>
module attributes {stable_mosaic.version = 11 : i64} {
  func.func @relu6_kernel(%arg0: i32, %arg1: memref<2x4096xf32, #tpu.memory_space<vmem>>, %arg2: memref<2x4096xf32, #tpu.memory_space<vmem>>) attributes {dimension_semantics = [#tpu.dimension_semantics<parallel>], iteration_bounds = array<i64: 1>, scalar_prefetch = 0 : i64, scratch_operands = 0 : i64, tpu.core_type = #tpu.core_type<tc>, window_params = [{transform_indices = @transform_0, window_bounds = array<i64: 2, 4096>}, {transform_indices = @transform_1, window_bounds = array<i64: 2, 4096>}]} {
    %c0 = arith.constant 0 : index
    %c0_0 = arith.constant 0 : index
    %0 = vector.load %arg1[%c0, %c0_0] : memref<2x4096xf32, #tpu.memory_space<vmem>>, vector<2x4096xf32>
    %cst = arith.constant 0.000000e+00 : f32
    %1 = vector.broadcast %cst : f32 to vector<2x4096xf32>
    %2 = arith.maximumf %0, %1 : vector<2x4096xf32>
    %cst_1 = arith.constant 6.000000e+00 : f32
    %3 = vector.broadcast %cst_1 : f32 to vector<2x4096xf32>
    %4 = arith.minimumf %2, %3 : vector<2x4096xf32>
    %c0_2 = arith.constant 0 : index
    %c0_3 = arith.constant 0 : index
    %5 = vector.load %arg2[%c0_2, %c0_3] : memref<2x4096xf32, #tpu.memory_space<vmem>>, vector<2x4096xf32>
    tpu.vector_store %arg2[%c0_2, %c0_3], %4 {strides = array<i32>} : memref<2x4096xf32, #tpu.memory_space<vmem>>, vector<2x4096xf32>,
    return
  }
  func.func @transform_0(%arg0: i32) -> (i32, i32) {
    %c0_i32 = arith.constant 0 : i32
    %c0_i32_0 = arith.constant 0 : i32
    return %arg0, %c0_i32 : i32, i32
  }
  func.func @transform_1(%arg0: i32) -> (i32, i32) {
    %c0_i32 = arith.constant 0 : i32
    %c0_i32_0 = arith.constant 0 : i32
    return %arg0, %c0_i32 : i32, i32
  }
}

</mosaic_0001>

<llo_original>
// kernel: tpu_custom_call.1
$region0: #{tpu_custom_call.1}
  #allocation0 [shape = 'u32[]', space=smem, size = 0x4, offset = 0x4, fixed_abs, tag = 'smem constant byte address 0x4 - core index']
  #allocation1 [shape = 'u32[144,128]{1,0:T(1,128)}', space=vmem, size = 0x12000, scoped, tag = 'internal scratch']
  %s0 = inlined_call_operand.hbm [shape: f32[2,4096], index: 0, kind: input, shape index: {}]
  %s1 = inlined_call_operand.hbm [shape: f32[2,4096], index: 1, kind: output, shape index: {}]
  %s2 = sld [smem:[#allocation0]]
  $region18: #{tpu_custom_call.1} parent=0
    _
  %s4 = ssub.s32 1, %s2
  %s5 = scalar_select 0, %s4, %s2
  $region1: #{tpu_custom_call.1} parent=0
    #allocation2 [shape = 'u8[32768]{0}', space=vmem, size = 0x8000, scoped, tag = 'input window, operand 0, single buffered']
    #allocation3 [shape = 's32[1]{0}', space=sflag, size = 0x4, scoped, tag = 'scoped memory for tpu_custom_call.1']
    #allocation4 [shape = 's32[1]{0}', space=sflag, size = 0x4, scoped, tag = 'scoped memory for tpu_custom_call.1']
    #allocation5 [shape = 'u8[32768]{0}', space=vmem, size = 0x8000, scoped, tag = 'output window, operand 0, single buffered']
    %6 = vsyncpa [#allocation3], 0
    %7 = vsyncpa [#allocation4], 0
    // Predicated region
    $region2: #{tpu_custom_call.1} parent=1 // pred_check
      _
    $region3: #{tpu_custom_call.1} parent=1 // pred_check_branch
      %9 = sbr.rel (0) target = $region5
    $region4: #{tpu_custom_call.1} parent=1 // pred_region
      %s11 = ssub.s32 1024, 1024
      %12 = vsyncadd [#allocation3], %s11
      %s14 = sshll.u32 [#allocation2], 4
      %s15 = int_to_ptr.vmem [resolvable:$true] %s14
      %17 = dma.hbm_to_vmem [thread:$0]  %s0, 1024, %s15, [#allocation3]
    $region5: #{tpu_custom_call.1} parent=1 // pred_fallthru
      _
    // Predicated region
    $region6: #{tpu_custom_call.1} parent=1 // pred_check
      _
    $region7: #{tpu_custom_call.1} parent=1 // pred_check_branch
      %19 = sbr.rel (0) target = $region9
    $region8: #{tpu_custom_call.1} parent=1 // pred_region
      %20 = dma.done [#allocation3], 1024
    $region9: #{tpu_custom_call.1} parent=1 // pred_fallthru
      _
    %v21 = vld [vmem:[#allocation2] sm:$0xff]
    %v22 = vld [vmem:[#allocation2 + $0x8] sm:$0xff]
    %v23 = vld [vmem:[#allocation2 + $0x10] sm:$0xff]
    %v24 = vld [vmem:[#allocation2 + $0x18] sm:$0xff]
    %v25 = vld [vmem:[#allocation2 + $0x20] sm:$0xff]
    %v26 = vld [vmem:[#allocation2 + $0x28] sm:$0xff]
    %v27 = vld [vmem:[#allocation2 + $0x30] sm:$0xff]
    %v28 = vld [vmem:[#allocation2 + $0x38] sm:$0xff]
    %v29 = vmax.f32 %v21, 0.0
    %v30 = vmax.f32 %v22, 0.0
    %v31 = vmax.f32 %v23, 0.0
    %v32 = vmax.f32 %v24, 0.0
    %v33 = vmax.f32 %v25, 0.0
    %v34 = vmax.f32 %v26, 0.0
    %v35 = vmax.f32 %v27, 0.0
    %v36 = vmax.f32 %v28, 0.0
    %v37 = vmin.f32 %v29, 6.0
    %v38 = vmin.f32 %v30, 6.0
    %v39 = vmin.f32 %v31, 6.0
    %v40 = vmin.f32 %v32, 6.0
    %v41 = vmin.f32 %v33, 6.0
    %v42 = vmin.f32 %v34, 6.0
    %v43 = vmin.f32 %v35, 6.0
    %v44 = vmin.f32 %v36, 6.0
    %45 = vst [vmem:[#allocation5] sm:$0xff] %v37
    %46 = vst [vmem:[#allocation5 + $0x8] sm:$0xff] %v38
    %47 = vst [vmem:[#allocation5 + $0x10] sm:$0xff] %v39
    %48 = vst [vmem:[#allocation5 + $0x18] sm:$0xff] %v40
    %49 = vst [vmem:[#allocation5 + $0x20] sm:$0xff] %v41
    %50 = vst [vmem:[#allocation5 + $0x28] sm:$0xff] %v42
    %51 = vst [vmem:[#allocation5 + $0x30] sm:$0xff] %v43
    %52 = vst [vmem:[#allocation5 + $0x38] sm:$0xff] %v44
    // Predicated region
    $region10: #{tpu_custom_call.1} parent=1 // pred_check
      _
    $region11: #{tpu_custom_call.1} parent=1 // pred_check_branch
      %54 = sbr.rel (0) target = $region13
    $region12: #{tpu_custom_call.1} parent=1 // pred_region
      %s56 = ssub.s32 1024, 1024
      %57 = vsyncadd [#allocation4], %s56
      %s59 = sshll.u32 [#allocation5], 4
      %s60 = int_to_ptr.vmem [resolvable:$true] %s59
      %62 = dma.vmem_to_hbm [thread:$0]  %s60, 1024, %s1, [#allocation4]
    $region13: #{tpu_custom_call.1} parent=1 // pred_fallthru
      _
    // Predicated region
    $region14: #{tpu_custom_call.1} parent=1 // pred_check
      _
    $region15: #{tpu_custom_call.1} parent=1 // pred_check_branch
      %64 = sbr.rel (0) target = $region17
    $region16: #{tpu_custom_call.1} parent=1 // pred_region
      %65 = dma.done [#allocation4], 1024
    $region17: #{tpu_custom_call.1} parent=1 // pred_fallthru
      _
    %66 = vsyncpa [#allocation3], 1
    %67 = vsyncpa [#allocation4], 1

</llo_original>
